<compile_context>
chip_gen: v7x
topology: tpu7x:2x2x1
jax: 0.10.0
libtpu: 0.0.40
codegen_flags: <defaults>
</compile_context>

<pallas_src>
import functools
import math

import jax
import jax.numpy as jnp
from jax.experimental import pallas as pl
from jax.experimental.pallas import tpu as pltpu

_LANES = 128
_SUBLANES = 8


def _round_up(x, m):
    return ((x + m - 1) // m) * m


def _pick_block_rows(itemsize):
    """Per-generation block size (rows of 128 lanes)."""
    kind = ""
    try:
        kind = jax.devices()[0].device_kind.lower()
    except Exception:  # pragma: no cover - conservative fallback
        pass
    base = 8192 if "v7" in kind else 2048
    if itemsize <= 2:
        base *= 2  # keep per-step DMA bytes constant for 2-byte dtypes
    return base


def _pick_vmem_limit():
    kind = ""
    try:
        kind = jax.devices()[0].device_kind.lower()
    except Exception:  # pragma: no cover
        pass
    # v7x: 64 MiB physical VMEM -> leave headroom; others: 128 MiB physical.
    return (56 if "v7" in kind else 32) * 1024 * 1024


def _l1_mu_kernel(pred_ref, label_ref, out_ref, *, mu, row_tile,
                  valid_rows_last, mask_last):
    """One block: mu-law compress, abs-diff, fold to an (8,128) partial."""
    mu_f = jnp.float32(mu)

    def partial_sum(p, l):
        # Raw |log1p(mu*p) - log1p(mu*l)|; the 1/log(1+mu) scale is hoisted
        # to the wrapper (commutes with abs/sum).
        d = jnp.abs(jnp.log1p(mu_f * p) - jnp.log1p(mu_f * l))
        # Pure-VPU fold to an (8,128) tile; the wrapper's jnp.sum finishes it.
        return jnp.sum(d.reshape(row_tile // _SUBLANES, _SUBLANES, _LANES),
                       axis=0)

    p = pred_ref[...].astype(jnp.float32)
    l = label_ref[...].astype(jnp.float32)

    if mask_last:
        last = pl.num_programs(0) - 1

        @pl.when(pl.program_id(0) != last)
        def _():
            out_ref[0] = partial_sum(p, l)

        @pl.when(pl.program_id(0) == last)
        def _():
            # Only the Pallas-implicit OOB rows of the partial last block need
            # masking; mask the inputs so no transcendental sees garbage.
            row = jax.lax.broadcasted_iota(jnp.int32, (row_tile, _LANES), 0)
            keep = row < valid_rows_last
            zero = jnp.float32(0.0)
            out_ref[0] = partial_sum(jnp.where(keep, p, zero),
                                     jnp.where(keep, l, zero))
    else:
        out_ref[0] = partial_sum(p, l)


def l1_loss_mu(pred, label, mu=5000, *, block_rows=None,
               small_n_threshold=1 << 16):
    """Pallas equivalent of L1LossMu.forward (mean reduction)."""
    assert pred.shape == label.shape
    n = pred.size
    inv_log = 1.0 / math.log(1.0 + mu)

    if n < small_n_threshold:
        # pallas_call launch overhead dominates for tiny tensors; XLA fuses
        # this elementwise+reduce just fine.
        mp = jnp.log1p(mu * pred.astype(jnp.float32))
        ml = jnp.log1p(mu * label.astype(jnp.float32))
        return jnp.mean(jnp.abs(mp - ml)) * jnp.float32(inv_log)

    p_flat = pred.reshape(-1)
    l_flat = label.reshape(-1)

    rem = n % _LANES
    if rem:
        # Pad by < 128 zeros so the slab reshape is legal.  Zero padding
        # contributes |log1p(0) - log1p(0)| = 0, so no mask is needed for it.
        # TODO(synk): zero-copy ragged-tail path (manual DMA / plain-jnp tail)
        # to avoid this full-array rewrite when numel % 128 != 0.
        pad = _LANES - rem
        p_flat = jnp.pad(p_flat, (0, pad))
        l_flat = jnp.pad(l_flat, (0, pad))

    rows = p_flat.size // _LANES

    if block_rows is None:
        block_rows = _pick_block_rows(jnp.dtype(pred.dtype).itemsize)
    row_tile = min(block_rows, _round_up(rows, _SUBLANES))
    num_blocks = pl.cdiv(rows, row_tile)
    if num_blocks == 1 and rows > _SUBLANES:
        # Guarantee >= 2 blocks so the "parallel" grid axis can engage both
        # TensorCores on v7x (no-op on single-TC v5e/v6e).
        row_tile = max(_SUBLANES, _round_up(pl.cdiv(rows, 2), _SUBLANES))
        num_blocks = pl.cdiv(rows, row_tile)

    mask_last = (rows % row_tile) != 0
    valid_rows_last = rows - (num_blocks - 1) * row_tile

    p2 = p_flat.reshape(rows, _LANES)
    l2 = l_flat.reshape(rows, _LANES)

    partials = pl.pallas_call(
        functools.partial(_l1_mu_kernel, mu=mu, row_tile=row_tile,
                          valid_rows_last=valid_rows_last,
                          mask_last=mask_last),
        out_shape=jax.ShapeDtypeStruct((num_blocks, _SUBLANES, _LANES),
                                       jnp.float32),
        grid=(num_blocks,),
        in_specs=[
            pl.BlockSpec((row_tile, _LANES), lambda i: (i, 0)),
            pl.BlockSpec((row_tile, _LANES), lambda i: (i, 0)),
        ],
        out_specs=pl.BlockSpec((1, _SUBLANES, _LANES), lambda i: (i, 0, 0)),
        compiler_params=pltpu.CompilerParams(
            dimension_semantics=("parallel",),
            vmem_limit_bytes=_pick_vmem_limit(),
        ),
    )(p2, l2)

    # Tiny final reduction + hoisted mu-law scale + mean normalization.
    return jnp.sum(partials) * jnp.float32(inv_log) / jnp.float32(n)


def _reference(pred, label, mu=5000):
    mp = jnp.log1p(mu * pred.astype(jnp.float32)) / math.log(1.0 + mu)
    ml = jnp.log1p(mu * label.astype(jnp.float32)) / math.log(1.0 + mu)
    return jnp.mean(jnp.abs(mp - ml))


if __name__ == "__main__":
    key = jax.random.PRNGKey(0)
    ks = jax.random.split(key, 8)

    # 1) Small HDR-like NCHW input in [0, 1]: wrapper short-circuits to the
    #    fused XLA path.
    p1 = jax.random.uniform(ks[0], (2, 4, 16, 16), dtype=jnp.float32)
    l1 = jax.random.uniform(ks[1], (2, 4, 16, 16), dtype=jnp.float32)
    out1 = jax.block_until_ready(l1_loss_mu(p1, l1, mu=5000))
    ref1 = _reference(p1, l1, mu=5000)
    assert jnp.allclose(out1, ref1, rtol=5e-5, atol=1e-6), (out1, ref1)

    # 2) Same small input forced through the Pallas kernel (2 blocks, no mask).
    out2 = jax.block_until_ready(l1_loss_mu(p1, l1, mu=5000,
                                            small_n_threshold=0))
    assert jnp.allclose(out2, ref1, rtol=5e-5, atol=1e-6), (out2, ref1)

    # 3) Larger multi-block f32 input, numel % 128 == 0 -> zero-copy slab,
    #    partial last block masked only on the last grid step.
    p3 = jax.random.uniform(ks[2], (2, 4, 128, 192), dtype=jnp.float32)
    l3 = jax.random.uniform(ks[3], (2, 4, 128, 192), dtype=jnp.float32)
    out3 = jax.block_until_ready(l1_loss_mu(p3, l3, mu=5000))
    ref3 = _reference(p3, l3, mu=5000)
    assert jnp.allclose(out3, ref3, rtol=5e-5, atol=1e-6), (out3, ref3)

    # 4) Ragged bf16 input (numel % 128 != 0): tiny pad-to-128, last-block
    #    mask, in-kernel upcast.
    p4 = jax.random.uniform(ks[4], (3, 3, 95, 97),
                            dtype=jnp.float32).astype(jnp.bfloat16)
    l4 = jax.random.uniform(ks[5], (3, 3, 95, 97),
                            dtype=jnp.float32).astype(jnp.bfloat16)
    out4 = jax.block_until_ready(l1_loss_mu(p4, l4, mu=5000,
                                            small_n_threshold=0))
    ref4 = _reference(p4, l4, mu=5000)
    assert jnp.allclose(out4, ref4, rtol=5e-5, atol=1e-6), (out4, ref4)

    print("KERNEL_OK")
</pallas_src>

<mosaic_0001>
module attributes {stable_mosaic.version = 11 : i64} {
  func.func @_l1_mu_kernel(%arg0: i32, %arg1: memref<8x128xf32, #tpu.memory_space<vmem>>, %arg2: memref<8x128xf32, #tpu.memory_space<vmem>>, %arg3: memref<1x8x128xf32, #tpu.memory_space<vmem>>) attributes {dimension_semantics = [#tpu.dimension_semantics<parallel>], iteration_bounds = array<i64: 2>, scalar_prefetch = 0 : i64, scratch_operands = 0 : i64, tpu.core_type = #tpu.core_type<tc>, window_params = [{transform_indices = @transform_0, window_bounds = array<i64: 8, 128>}, {transform_indices = @transform_1, window_bounds = array<i64: 8, 128>}, {transform_indices = @transform_2, window_bounds = array<i64: 1, 8, 128>}]} {
    %c0 = arith.constant 0 : index
    %c0_0 = arith.constant 0 : index
    %0 = vector.load %arg1[%c0, %c0_0] : memref<8x128xf32, #tpu.memory_space<vmem>>, vector<8x128xf32>
    %c0_1 = arith.constant 0 : index
    %c0_2 = arith.constant 0 : index
    %1 = vector.load %arg2[%c0_1, %c0_2] : memref<8x128xf32, #tpu.memory_space<vmem>>, vector<8x128xf32>
    %cst = arith.constant 5.000000e+03 : f32
    %2 = vector.broadcast %cst : f32 to vector<8x128xf32>
    %3 = arith.mulf %2, %0 : vector<8x128xf32>
    %4 = math.log1p %3 : vector<8x128xf32>
    %cst_3 = arith.constant 5.000000e+03 : f32
    %5 = vector.broadcast %cst_3 : f32 to vector<8x128xf32>
    %6 = arith.mulf %5, %1 : vector<8x128xf32>
    %7 = math.log1p %6 : vector<8x128xf32>
    %8 = arith.subf %4, %7 : vector<8x128xf32>
    %9 = math.absf %8 : vector<8x128xf32>
    %10 = vector.shape_cast %9 : vector<8x128xf32> to vector<1x8x128xf32>
    %cst_4 = arith.constant dense<0.000000e+00> : vector<8x128xf32>
    %11 = vector.multi_reduction <add>, %10, %cst_4 [0] : vector<1x8x128xf32> to vector<8x128xf32>
    %c0_5 = arith.constant 0 : index
    %c0_6 = arith.constant 0 : index
    %c0_7 = arith.constant 0 : index
    %12 = vector.load %arg3[%c0_5, %c0_6, %c0_7] : memref<1x8x128xf32, #tpu.memory_space<vmem>>, vector<1x8x128xf32>
    %13 = vector.shape_cast %12 : vector<1x8x128xf32> to vector<8x128xf32>
    %14 = vector.shape_cast %11 : vector<8x128xf32> to vector<1x8x128xf32>
    tpu.vector_store %arg3[%c0_5, %c0_6, %c0_7], %14 {strides = array<i32>} : memref<1x8x128xf32, #tpu.memory_space<vmem>>, vector<1x8x128xf32>,
    return
  }
  func.func @transform_0(%arg0: i32) -> (i32, i32) {
    %c0_i32 = arith.constant 0 : i32
    %c0_i32_0 = arith.constant 0 : i32
    return %arg0, %c0_i32 : i32, i32
  }
  func.func @transform_1(%arg0: i32) -> (i32, i32) {
    %c0_i32 = arith.constant 0 : i32
    %c0_i32_0 = arith.constant 0 : i32
    return %arg0, %c0_i32 : i32, i32
  }
  func.func @transform_2(%arg0: i32) -> (i32, i32, i32) {
    %c0_i32 = arith.constant 0 : i32
    %c0_i32_0 = arith.constant 0 : i32
    %c0_i32_1 = arith.constant 0 : i32
    return %arg0, %c0_i32, %c0_i32_0 : i32, i32, i32
  }
}

</mosaic_0001>

<llo_original>
// kernel: tpu_custom_call.1
$region0: #{tpu_custom_call.1}
  #allocation0 [shape = 'u32[]', space=smem, size = 0x4, offset = 0x4, fixed_abs, tag = 'smem constant byte address 0x4 - core index']
  #allocation1 [shape = 'u32[144,128]{1,0:T(1,128)}', space=vmem, size = 0x12000, scoped, tag = 'internal scratch']
  %s0 = inlined_call_operand.hbm [shape: f32[16,128], index: 0, kind: input, shape index: {}]
  %s1 = inlined_call_operand.hbm [shape: f32[16,128], index: 1, kind: input, shape index: {}]
  %s2 = inlined_call_operand.hbm [shape: f32[2,8,128], index: 2, kind: output, shape index: {}]
  %s3 = sld [smem:[#allocation0]]
  $region49: #{tpu_custom_call.1} parent=0
    _
  %s5 = ssub.s32 1, %s3
  %s6 = scalar_select 0, %s5, %s3
  $region1: #{tpu_custom_call.1} parent=0
    #allocation2 [shape = 'u8[8192]{0}', space=vmem, size = 0x2000, scoped, tag = 'input window, operand 0']
    #allocation3 [shape = 's32[2]{0}', space=sflag, size = 0x8, scoped, tag = 'scoped memory for tpu_custom_call.1']
    #allocation4 [shape = 's32[2]{0}', space=sflag, size = 0x8, scoped, tag = 'scoped memory for tpu_custom_call.1']
    #allocation5 [shape = 'u8[8192]{0}', space=vmem, size = 0x2000, scoped, tag = 'input window, operand 1']
    #allocation6 [shape = 's32[2]{0}', space=sflag, size = 0x8, scoped, tag = 'scoped memory for tpu_custom_call.1']
    #allocation7 [shape = 'u8[8192]{0}', space=vmem, size = 0x2000, scoped, tag = 'output window, operand 0']
    %7 = vsyncpa [#allocation3], 0
    %s8 = scalar_lea.sflag [#allocation3], 1
    %9 = vsyncpa %s8, 0
    %10 = vsyncpa [#allocation6], 0
    %s11 = scalar_lea.sflag [#allocation6], 1
    %12 = vsyncpa %s11, 0
    %13 = vsyncpa [#allocation4], 0
    %s14 = scalar_lea.sflag [#allocation4], 1
    %15 = vsyncpa %s14, 0
    loop: start=0, step=1, limit=4
    $region2: #{tpu_custom_call.1} parent=1 // loop_pre_header
      _
    $region3: #{tpu_custom_call.1} parent=1 // loop_header
      %s17 = sphi 0, %s21
      %p18 = scmp.ge.s32.totalorder %s17, 4
      %s27 = sphi 0, %s29
      %s30 = sphi 0, %s27
      %s31 = sphi 0, %s30
      %s47 = sphi 0, %s31
      %s53 = sphi 0, %s55
      %s56 = sphi 0, %s53
      %s57 = sphi 0, %s56
      %s73 = sphi 0, %s57
      %s79 = sphi 0, %s81
      %s82 = sphi 0, %s79
      %s83 = sphi 0, %s82
      %s99 = sphi 0, %s83
    $region4: #{tpu_custom_call.1} parent=1 // loop_header_branch
      %20 = sbr.rel (%p18) target = $region8
    $region5: #{tpu_custom_call.1} parent=1 // loop_body
      %s22 = ssub.s32 %s17, 1
      %s23 = ssub.s32 %s17, 2
      %s24 = sadd.s32 %s17, 1
      %s25 = ssub.s32 %s17, %s24
      %p26 = scmp.eq.s32.totalorder %s25, 0
      %s28 = sadd.s32 %s27, 1
      %s29 = scalar_select %p26, %s27, %s28
      %p32 = pneg %p26
      %p33 = scmp.eq.s32.totalorder %s17, 1
      %p34 = por %p32, %p33
      %p35 = scmp.ne.s32.totalorder %s27, %s30
      %p36 = scmp.eq.s32.totalorder %s17, 0
      %p37 = por %p35, %p36
      %p38 = scmp.ne.s32.totalorder %s27, %s30
      %p39 = scmp.eq.s32.totalorder %s22, 1
      %p40 = por %p38, %p39
      %p41 = scmp.ne.s32.totalorder %s30, %s31
      %p42 = scmp.eq.s32.totalorder %s22, 0
      %p43 = por %p41, %p42
      %p44 = scmp.ne.s32.totalorder %s30, %s31
      %p45 = scmp.eq.s32.totalorder %s23, 1
      %p46 = por %p44, %p45
      %p48 = scmp.ne.s32.totalorder %s31, %s47
      %p49 = scmp.eq.s32.totalorder %s23, 0
      %p50 = por %p48, %p49
      %s51 = ssub.s32 %s17, %s24
      %p52 = scmp.eq.s32.totalorder %s51, 0
      %s54 = sadd.s32 %s53, 1
      %s55 = scalar_select %p52, %s53, %s54
      %p58 = pneg %p52
      %p59 = scmp.eq.s32.totalorder %s17, 1
      %p60 = por %p58, %p59
      %p61 = scmp.ne.s32.totalorder %s53, %s56
      %p62 = scmp.eq.s32.totalorder %s17, 0
      %p63 = por %p61, %p62
      %p64 = scmp.ne.s32.totalorder %s53, %s56
      %p65 = scmp.eq.s32.totalorder %s22, 1
      %p66 = por %p64, %p65
      %p67 = scmp.ne.s32.totalorder %s56, %s57
      %p68 = scmp.eq.s32.totalorder %s22, 0
      %p69 = por %p67, %p68
      %p70 = scmp.ne.s32.totalorder %s56, %s57
      %p71 = scmp.eq.s32.totalorder %s23, 1
      %p72 = por %p70, %p71
      %p74 = scmp.ne.s32.totalorder %s57, %s73
      %p75 = scmp.eq.s32.totalorder %s23, 0
      %p76 = por %p74, %p75
      %s77 = ssub.s32 %s17, %s24
      %p78 = scmp.eq.s32.totalorder %s77, 0
      %s80 = sadd.s32 %s79, 1
      %s81 = scalar_select %p78, %s79, %s80
      %p84 = pneg %p78
      %p85 = scmp.eq.s32.totalorder %s17, 1
      %p86 = por %p84, %p85
      %p87 = scmp.ne.s32.totalorder %s79, %s82
      %p88 = scmp.eq.s32.totalorder %s17, 0
      %p89 = por %p87, %p88
      %p90 = scmp.ne.s32.totalorder %s79, %s82
      %p91 = scmp.eq.s32.totalorder %s22, 1
      %p92 = por %p90, %p91
      %p93 = scmp.ne.s32.totalorder %s82, %s83
      %p94 = scmp.eq.s32.totalorder %s22, 0
      %p95 = por %p93, %p94
      %p96 = scmp.ne.s32.totalorder %s82, %s83
      %p97 = scmp.eq.s32.totalorder %s23, 1
      %p98 = por %p96, %p97
      %p100 = scmp.ne.s32.totalorder %s83, %s99
      %p101 = scmp.eq.s32.totalorder %s23, 0
      %p102 = por %p100, %p101
      %p103 = scmp.le.s32.totalorder 1, %s17
      %p104 = scmp.lt.s32.totalorder %s17, 3
      %p105 = pnand %p103, %p104
      %p106 = pneg %p105
      // Predicated region
      $region9: #{tpu_custom_call.1} parent=5 // pred_check
        _
      $region10: #{tpu_custom_call.1} parent=5 // pred_check_branch
        %108 = sbr.rel (%p105) target = $region12
      $region11: #{tpu_custom_call.1} parent=5 // pred_region
        %s109 = ssub.s32 %s17, 1
      $region12: #{tpu_custom_call.1} parent=5 // pred_fallthru
        _
      %p110 = scmp.lt.s32.totalorder %s17, 2
      // Predicated region
      $region13: #{tpu_custom_call.1} parent=5 // pred_check
        %p111 = pneg %p110
      $region14: #{tpu_custom_call.1} parent=5 // pred_check_branch
        %113 = sbr.rel (%p111) target = $region16
      $region15: #{tpu_custom_call.1} parent=5 // pred_region
        // Predicated region
        $region17: #{tpu_custom_call.1} parent=15 // pred_check
          %p114 = pneg %p37
        $region18: #{tpu_custom_call.1} parent=15 // pred_check_branch
          %116 = sbr.rel (%p114) target = $region20
        $region19: #{tpu_custom_call.1} parent=15 // pred_region
          %s117 = sand.u32 %s27, 1
          %s118 = scalar_lea.sflag [#allocation3], %s117
          %s119 = sand.u32 %s27, 1
          %s120 = smul.addr %s119, 8
          %s121 = scalar_lea.vmem [#allocation2], %s120
          %s123 = ssub.s32 128, 128
          %124 = vsyncadd %s118, %s123
          %s125 = smul.addr %s17, 128
          %s126 = scalar_lea.hbm %s0, %s125
          %s128 = sshll.u32 %s121, 4
          %s129 = int_to_ptr.vmem [resolvable:$true] %s128
          %131 = dma.hbm_to_vmem [thread:$0]  %s126, 128, %s129, %s118
        $region20: #{tpu_custom_call.1} parent=15 // pred_fallthru
          _
        // Predicated region
        $region21: #{tpu_custom_call.1} parent=15 // pred_check
          %p132 = pneg %p63
        $region22: #{tpu_custom_call.1} parent=15 // pred_check_branch
          %134 = sbr.rel (%p132) target = $region24
        $region23: #{tpu_custom_call.1} parent=15 // pred_region
          %s135 = sand.u32 %s53, 1
          %s136 = scalar_lea.sflag [#allocation6], %s135
          %s137 = sand.u32 %s53, 1
          %s138 = smul.addr %s137, 8
          %s139 = scalar_lea.vmem [#allocation5], %s138
          %s141 = ssub.s32 128, 128
          %142 = vsyncadd %s136, %s141
          %s143 = smul.addr %s17, 128
          %s144 = scalar_lea.hbm %s1, %s143
          %s146 = sshll.u32 %s139, 4
          %s147 = int_to_ptr.vmem [resolvable:$true] %s146
          %149 = dma.hbm_to_vmem [thread:$0]  %s144, 128, %s147, %s136
        $region24: #{tpu_custom_call.1} parent=15 // pred_fallthru
          _
      $region16: #{tpu_custom_call.1} parent=5 // pred_fallthru
        _
      %p150 = scmp.le.s32.totalorder 1, %s17
      %p151 = scmp.lt.s32.totalorder %s17, 3
      %p152 = pnand %p150, %p151
      %p153 = pneg %p152
      // Predicated region
      $region25: #{tpu_custom_call.1} parent=5 // pred_check
        _
      $region26: #{tpu_custom_call.1} parent=5 // pred_check_branch
        %155 = sbr.rel (%p152) target = $region28
      $region27: #{tpu_custom_call.1} parent=5 // pred_region
        %s156 = ssub.s32 %s17, 1
        %s157 = sand.u32 %s30, 1
        %s158 = scalar_lea.sflag [#allocation3], %s157
        %s159 = sand.u32 %s30, 1
        %s160 = smul.addr %s159, 8
        %s161 = scalar_lea.vmem [#allocation2], %s160
        // Predicated region
        $region29: #{tpu_custom_call.1} parent=27 // pred_check
          %p162 = pneg %p43
        $region30: #{tpu_custom_call.1} parent=27 // pred_check_branch
          %164 = sbr.rel (%p162) target = $region32
        $region31: #{tpu_custom_call.1} parent=27 // pred_region
          %165 = dma.done %s158, 128
        $region32: #{tpu_custom_call.1} parent=27 // pred_fallthru
          _
        %s166 = sand.u32 %s56, 1
        %s167 = scalar_lea.sflag [#allocation6], %s166
        %s168 = sand.u32 %s56, 1
        %s169 = smul.addr %s168, 8
        %s170 = scalar_lea.vmem [#allocation5], %s169
        // Predicated region
        $region33: #{tpu_custom_call.1} parent=27 // pred_check
          %p171 = pneg %p69
        $region34: #{tpu_custom_call.1} parent=27 // pred_check_branch
          %173 = sbr.rel (%p171) target = $region36
        $region35: #{tpu_custom_call.1} parent=27 // pred_region
          %174 = dma.done %s167, 128
        $region36: #{tpu_custom_call.1} parent=27 // pred_fallthru
          _
        %s175 = sand.u32 %s30, 1
        %s176 = scalar_lea.sflag [#allocation3], %s175
        %s177 = sand.u32 %s30, 1
        %s178 = smul.addr %s177, 8
        %s179 = scalar_lea.vmem [#allocation2], %s178
        %p180 = pneg %p43
        %p181 = pneg %p40
        %s182 = sand.u32 %s56, 1
        %s183 = scalar_lea.sflag [#allocation6], %s182
        %s184 = sand.u32 %s56, 1
        %s185 = smul.addr %s184, 8
        %s186 = scalar_lea.vmem [#allocation5], %s185
        %p187 = pneg %p69
        %p188 = pneg %p66
        %p189 = pneg %p95
        %p190 = pneg %p92
        %s191 = sand.u32 %s82, 1
        %s192 = scalar_lea.sflag [#allocation4], %s191
        %s193 = sand.u32 %s82, 1
        %s194 = smul.addr %s193, 8
        %s195 = scalar_lea.vmem [#allocation7], %s194
        %v196 = vld [vmem:[%s161] sm:$0xff]
        %v197 = vld [vmem:[%s170] sm:$0xff]
        %v198 = vmul.f32 %v196, 5000.0
        %v199 = vadd.f32 %v198, 1.0
        %v200 = vlog2.pop %v199
        %v201 = vmul.f32 %v200, 0.6931472
        %v202 = vmul.f32 -0.5, %v198
        %v203 = vadd.f32 %v202, 1.0
        %v204 = vmul.f32 %v203, %v198
        %v205 = vand.u32 2147483647, %v198
        %vm206 = vcmp.lt.f32.partialorder %v205, 0.0004427343
        %v207 = vsel %vm206, %v204, %v201
        %v208 = vmul.f32 %v197, 5000.0
        %v209 = vadd.f32 %v208, 1.0
        %v210 = vlog2.pop %v209
        %v211 = vmul.f32 %v210, 0.6931472
        %v212 = vmul.f32 -0.5, %v208
        %v213 = vadd.f32 %v212, 1.0
        %v214 = vmul.f32 %v213, %v208
        %v215 = vand.u32 2147483647, %v208
        %vm216 = vcmp.lt.f32.partialorder %v215, 0.0004427343
        %v217 = vsel %vm216, %v214, %v211
        %v218 = vsub.f32 %v207, %v217
        %v219 = vand.u32 2147483647, %v218
        %v220 = vadd.f32 %v219, 0.0
        %221 = vst [vmem:[%s195] sm:$0xff] %v220
        %s222 = sand.u32 %s82, 1
        %s223 = scalar_lea.sflag [#allocation4], %s222
        %s224 = sand.u32 %s82, 1
        %s225 = smul.addr %s224, 8
        %s226 = scalar_lea.vmem [#allocation7], %s225
        // Predicated region
        $region37: #{tpu_custom_call.1} parent=27 // pred_check
          %p227 = pneg %p92
        $region38: #{tpu_custom_call.1} parent=27 // pred_check_branch
          %229 = sbr.rel (%p227) target = $region40
        $region39: #{tpu_custom_call.1} parent=27 // pred_region
          %s231 = ssub.s32 128, 128
          %232 = vsyncadd %s223, %s231
          %s233 = smul.addr %s22, 128
          %s234 = scalar_lea.hbm %s2, %s233
          %s236 = sshll.u32 %s226, 4
          %s237 = int_to_ptr.vmem [resolvable:$true] %s236
          %239 = dma.vmem_to_hbm [thread:$0]  %s237, 128, %s234, %s223
        $region40: #{tpu_custom_call.1} parent=27 // pred_fallthru
          _
      $region28: #{tpu_custom_call.1} parent=5 // pred_fallthru
        _
      %p240 = scmp.le.s32.totalorder 2, %s17
      // Predicated region
      $region41: #{tpu_custom_call.1} parent=5 // pred_check
        %p241 = pneg %p240
      $region42: #{tpu_custom_call.1} parent=5 // pred_check_branch
        %243 = sbr.rel (%p241) target = $region44
      $region43: #{tpu_custom_call.1} parent=5 // pred_region
        %s244 = ssub.s32 %s17, 2
        // Predicated region
        $region45: #{tpu_custom_call.1} parent=43 // pred_check
          %p245 = pneg %p98
        $region46: #{tpu_custom_call.1} parent=43 // pred_check_branch
          %247 = sbr.rel (%p245) target = $region48
        $region47: #{tpu_custom_call.1} parent=43 // pred_region
          %s248 = sand.u32 %s83, 1
          %s249 = scalar_lea.sflag [#allocation4], %s248
          %s250 = sand.u32 %s83, 1
          %s251 = smul.addr %s250, 8
          %s252 = scalar_lea.vmem [#allocation7], %s251
          %253 = dma.done %s249, 128
        $region48: #{tpu_custom_call.1} parent=43 // pred_fallthru
          _
      $region44: #{tpu_custom_call.1} parent=5 // pred_fallthru
        _
    $region6: #{tpu_custom_call.1} parent=1 // loop_footer
      %s21 = sadd.s32 1, %s17
    $region7: #{tpu_custom_call.1} parent=1 // loop_footer_branch
      %16 = sbr.rel target = $region3
    $region8: #{tpu_custom_call.1} parent=1 // loop_exit
      _
    %254 = vsyncpa [#allocation3], 1
    %s255 = scalar_lea.sflag [#allocation3], 1
    %256 = vsyncpa %s255, 1
    %257 = vsyncpa [#allocation6], 1
    %s258 = scalar_lea.sflag [#allocation6], 1
    %259 = vsyncpa %s258, 1
    %260 = vsyncpa [#allocation4], 1
    %s261 = scalar_lea.sflag [#allocation4], 1
    %262 = vsyncpa %s261, 1

</llo_original>
